<compile_context>
chip_gen: v7x
topology: tpu7x:2x2x1
jax: 0.10.0
libtpu: 0.0.40
codegen_flags: <defaults>
</compile_context>

<pallas_src>
import jax
import jax.numpy as jnp
from jax.experimental import pallas as pl
from jax.experimental.pallas import tpu as pltpu


# ----------------------------- tiling helpers --------------------------------

def _round_up(x, m):
    return ((x + m - 1) // m) * m


def _pick_tile(padded, cap):
    """Largest multiple of 128 that divides `padded` and is <= cap (>= 128)."""
    best = 128
    t = 256
    limit = min(cap, padded)
    while t <= limit:
        if padded % t == 0:
            best = t
        t += 128
    return best


def _vmem_capacity_bytes():
    try:
        return int(pltpu.get_tpu_info().vmem_capacity_bytes)
    except Exception:
        return 64 * 1024 * 1024  # conservative (v7x-sized) fallback


def _generation_config():
    """(tile_cap, vmem_limit_bytes) picked from the chip's VMEM capacity."""
    vmem = _vmem_capacity_bytes()
    if vmem >= 100 * 1024 * 1024:       # v5e / v6e: 128 MiB physical VMEM
        return 1024, 64 * 1024 * 1024
    # v7x: 64 MiB per TensorCore -> smaller tiles, leave compiler headroom.
    return 512, 48 * 1024 * 1024


# ------------------------------- kernel bodies --------------------------------

def _linear_kernel(x_ref, wt_ref, b_ref, o_ref):
    """Tiled (M, N, K) grid, reduction axis last.

    The output block index (i, j) is constant across k, so o_ref stays resident
    in VMEM for the whole K sweep: write the bias once at k == 0, then
    accumulate the partial products directly into it (f32 output dtype).
    """
    k = pl.program_id(2)

    @pl.when(k == 0)
    def _():
        o_ref[...] = jnp.broadcast_to(b_ref[...], o_ref.shape).astype(o_ref.dtype)

    o_ref[...] += jnp.dot(
        x_ref[...].astype(wt_ref.dtype),   # bf16 cast iff weights are bf16
        wt_ref[...],
        preferred_element_type=jnp.float32,
    ).astype(o_ref.dtype)


def _linear_single_block_kernel(x_ref, wt_ref, b_ref, o_ref):
    """Fast path: whole (padded) problem is one tile -- no grid, no pl.when."""
    o_ref[...] = (
        jnp.dot(x_ref[...].astype(wt_ref.dtype), wt_ref[...],
                preferred_element_type=jnp.float32)
        + b_ref[...]
    ).astype(o_ref.dtype)


# ------------------------------- param prep -----------------------------------

def prepare_wiwi_params(weight, bias, use_bf16=False):
    """One-time (init-time) prep: transpose + 128-pad the stationary weight/bias.

    weight: (dim_out, dim_in) as in torch.nn.Linear; bias: (dim_out,).
    use_bf16: store the weight as bf16 (halves its HBM stream, full MXU rate);
              accumulation stays f32 but results deviate slightly from torch
              f32 numerics -- keep False when exact parity is required.
    Returns wt_pad (K_pad, N_pad), b_pad (1, N_pad), dim_out.
    """
    dim_out, dim_in = weight.shape
    k_pad = _round_up(dim_in, 128)
    n_pad = _round_up(dim_out, 128)
    w_dtype = jnp.bfloat16 if use_bf16 else weight.dtype
    wt_pad = (
        jnp.zeros((k_pad, n_pad), w_dtype)
        .at[:dim_in, :dim_out].set(weight.T.astype(w_dtype))
    )
    b_pad = jnp.zeros((1, n_pad), jnp.float32).at[0, :dim_out].set(
        bias.astype(jnp.float32))
    return wt_pad, b_pad, dim_out


# --------------------------------- forward ------------------------------------

def wiwi_forward(x, wt_pad, b_pad, dim_out):
    """x: (B, dim_in) f32; wt_pad: (K_pad, N_pad); b_pad: (1, N_pad) f32."""
    B, dim_in = x.shape
    k_pad, n_pad = wt_pad.shape

    tile_cap, vmem_limit = _generation_config()

    # Sublane (M) axis.
    tm = min(tile_cap, _round_up(B, 8))
    m_pad = _round_up(B, tm)

    # Lane axes: tiles are multiples of 128 that divide the padded extents.
    # GEMV-like (small M) shapes get a 2x bigger K tile -> longer weight DMAs.
    tk_cap = 2 * tile_cap if tm <= 64 else tile_cap
    tk = _pick_tile(k_pad, tk_cap)
    tn = _pick_tile(n_pad, tile_cap)

    # If only one (i, j) tile exists, split N so both v7x TensorCores get work
    # (negligible extra per-step overhead on single-TC chips).
    if m_pad // tm == 1 and n_pad // tn == 1 and n_pad >= 256:
        tn = _pick_tile(n_pad, n_pad // 2)

    # Pad activations only when the shape actually needs it.
    if m_pad == B and k_pad == dim_in:
        x_pad = x
    else:
        x_pad = jnp.zeros((m_pad, k_pad), x.dtype).at[:B, :dim_in].set(x)

    grid = (m_pad // tm, n_pad // tn, k_pad // tk)

    if grid == (1, 1, 1):
        # Tiny problem: tiled pipeline is pure overhead -> single VMEM block.
        out = pl.pallas_call(
            _linear_single_block_kernel,
            out_shape=jax.ShapeDtypeStruct((m_pad, n_pad), x.dtype),
            compiler_params=pltpu.CompilerParams(vmem_limit_bytes=vmem_limit),
        )(x_pad, wt_pad, b_pad)
    else:
        m_blocks, n_blocks, _ = grid
        w_itemsize = jnp.dtype(wt_pad.dtype).itemsize
        flops = 2 * m_pad * k_pad * n_pad
        bytes_accessed = (
            k_pad * n_pad * w_itemsize * m_blocks   # weight re-streamed per i
            + m_pad * k_pad * 4 * n_blocks          # x re-streamed per j
            + m_pad * n_pad * 4                     # output written once
            + n_pad * 4                             # bias
        )
        out = pl.pallas_call(
            _linear_kernel,
            out_shape=jax.ShapeDtypeStruct((m_pad, n_pad), x.dtype),
            grid_spec=pltpu.PrefetchScalarGridSpec(
                num_scalar_prefetch=0,
                grid=grid,
                in_specs=[
                    pl.BlockSpec((tm, tk), lambda i, j, k: (i, k)),  # x tile
                    pl.BlockSpec((tk, tn), lambda i, j, k: (k, j)),  # weight
                    pl.BlockSpec((1, tn), lambda i, j, k: (0, j)),   # bias
                ],
                out_specs=pl.BlockSpec((tm, tn), lambda i, j, k: (i, j)),
            ),
            compiler_params=pltpu.CompilerParams(
                dimension_semantics=("parallel", "parallel", "arbitrary"),
                vmem_limit_bytes=vmem_limit,
            ),
            cost_estimate=pl.CostEstimate(
                flops=flops, transcendentals=0, bytes_accessed=bytes_accessed
            ),
        )(x_pad, wt_pad, b_pad)

    # Slice off padding only if present, then .squeeze() per the PyTorch module.
    if m_pad != B or n_pad != dim_out:
        out = out[:B, :dim_out]
    return jnp.squeeze(out)


# ----------------------------------- demo --------------------------------------

if __name__ == "__main__":
    key = jax.random.PRNGKey(0)

    def make_problem(k, B, dim_in, dim_out):
        kx, kw, kb = jax.random.split(k, 3)
        bound = 1.0 / (dim_in ** 0.5)
        weight = jax.random.uniform(kw, (dim_out, dim_in), jnp.float32, -bound, bound)
        bias = jax.random.uniform(kb, (dim_out,), jnp.float32, -bound, bound)
        x = jax.random.normal(kx, (B, dim_in), jnp.float32)
        return x, weight, bias

    def ref(x, weight, bias):
        return jnp.squeeze(
            jnp.matmul(x, weight.T, precision=jax.lax.Precision.HIGHEST) + bias)

    k0, k1 = jax.random.split(key)

    # --- primary demo: small shapes consistent with the module (fast path) ---
    x, weight, bias = make_problem(k0, 2, 16, 8)
    wt_pad, b_pad, dim_out = prepare_wiwi_params(weight, bias)
    y = wiwi_forward(x, wt_pad, b_pad, dim_out)
    jax.block_until_ready(y)
    y_ref = ref(x, weight, bias)
    assert y.shape == y_ref.shape
    assert jnp.allclose(y, y_ref, atol=5e-3, rtol=5e-3)

    # --- tiled-grid path sanity check (f32, torch-parity mode) ----------------
    xb, wb, bb = make_problem(k1, 8, 4096, 1024)
    wtb, bpb, dob = prepare_wiwi_params(wb, bb)
    yb = wiwi_forward(xb, wtb, bpb, dob)
    jax.block_until_ready(yb)
    yb_ref = ref(xb, wb, bb)
    assert yb.shape == yb_ref.shape
    assert jnp.allclose(yb, yb_ref, atol=1e-2, rtol=1e-2)

    # --- bf16-weight perf mode (f32 accumulation, looser tolerance) -----------
    wtb16, bpb16, _ = prepare_wiwi_params(wb, bb, use_bf16=True)
    yb16 = wiwi_forward(xb, wtb16, bpb16, dob)
    jax.block_until_ready(yb16)
    assert jnp.allclose(yb16, yb_ref, atol=5e-2, rtol=5e-2)

    print("KERNEL_OK")
</pallas_src>

<mosaic_0001>
module attributes {stable_mosaic.version = 11 : i64} {
  func.func @_linear_single_block_kernel(%arg0: memref<8x128xf32, #tpu.memory_space<vmem>>, %arg1: memref<128x128xf32, #tpu.memory_space<vmem>>, %arg2: memref<1x128xf32, #tpu.memory_space<vmem>>, %arg3: memref<8x128xf32, #tpu.memory_space<vmem>>) attributes {dimension_semantics = [], scalar_prefetch = 0 : i64, scratch_operands = 0 : i64, tpu.core_type = #tpu.core_type<tc>} {
    %c0 = arith.constant 0 : index
    %c0_0 = arith.constant 0 : index
    %0 = vector.load %arg0[%c0, %c0_0] : memref<8x128xf32, #tpu.memory_space<vmem>>, vector<8x128xf32>
    %c0_1 = arith.constant 0 : index
    %c0_2 = arith.constant 0 : index
    %1 = vector.load %arg1[%c0_1, %c0_2] : memref<128x128xf32, #tpu.memory_space<vmem>>, vector<128x128xf32>
    %cst = arith.constant dense<0.000000e+00> : vector<8x128xf32>
    %2 = tpu.matmul %0, %1, %cst {dimension_numbers = #tpu.dot_dimension_numbers<[1], [0], [0], [1], [0, 0, 1, 1], [], []>} : vector<8x128xf32>, vector<128x128xf32>, vector<8x128xf32> -> vector<8x128xf32>
    %c0_3 = arith.constant 0 : index
    %c0_4 = arith.constant 0 : index
    %3 = vector.load %arg2[%c0_3, %c0_4] : memref<1x128xf32, #tpu.memory_space<vmem>>, vector<1x128xf32>
    %4 = vector.broadcast %3 : vector<1x128xf32> to vector<8x128xf32>
    %5 = arith.addf %2, %4 : vector<8x128xf32>
    %c0_5 = arith.constant 0 : index
    %c0_6 = arith.constant 0 : index
    %6 = vector.load %arg3[%c0_5, %c0_6] : memref<8x128xf32, #tpu.memory_space<vmem>>, vector<8x128xf32>
    tpu.vector_store %arg3[%c0_5, %c0_6], %5 {strides = array<i32>} : memref<8x128xf32, #tpu.memory_space<vmem>>, vector<8x128xf32>,
    return
  }
}

</mosaic_0001>

<llo_original>
// kernel: tpu_custom_call.1
$region0: #{tpu_custom_call.1}
  #allocation0 [shape = 'u32[]', space=smem, size = 0x4, offset = 0x4, fixed_abs, tag = 'smem constant byte address 0x4 - core index']
  #allocation1 [shape = 'u32[144,128]{1,0:T(1,128)}', space=vmem, size = 0x12000, scoped, tag = 'internal scratch']
  %s0 = inlined_call_operand.hbm [shape: f32[8,128], index: 0, kind: input, shape index: {}]
  %s1 = inlined_call_operand.hbm [shape: f32[128,128], index: 1, kind: input, shape index: {}]
  %s2 = inlined_call_operand.vmem [shape: f32[1,128], index: 2, kind: input, shape index: {}]
  %s3 = inlined_call_operand.hbm [shape: f32[8,128], index: 3, kind: output, shape index: {}]
  %s4 = sld [smem:[#allocation0]]
  $region30: #{tpu_custom_call.1} parent=0
    _
  %s6 = ssub.s32 1, %s4
  %s7 = scalar_select 0, %s6, %s4
  $region1: #{tpu_custom_call.1} parent=0
    #allocation2 [shape = 'u8[4096]{0}', space=vmem, size = 0x1000, scoped, tag = 'input window, operand 0, single buffered']
    #allocation3 [shape = 's32[1]{0}', space=sflag, size = 0x4, scoped, tag = 'scoped memory for tpu_custom_call.1']
    #allocation4 [shape = 's32[1]{0}', space=sflag, size = 0x4, scoped, tag = 'scoped memory for tpu_custom_call.1']
    #allocation5 [shape = 'u8[65536]{0}', space=vmem, size = 0x10000, scoped, tag = 'input window, operand 1, single buffered']
    #allocation6 [shape = 's32[1]{0}', space=sflag, size = 0x4, scoped, tag = 'scoped memory for tpu_custom_call.1']
    #allocation7 [shape = 'u8[4096]{0}', space=vmem, size = 0x1000, scoped, tag = 'output window, operand 0, single buffered']
    %8 = vsyncpa [#allocation3], 0
    %9 = vsyncpa [#allocation6], 0
    %10 = vsyncpa [#allocation4], 0
    // Predicated region
    $region2: #{tpu_custom_call.1} parent=1 // pred_check
      _
    $region3: #{tpu_custom_call.1} parent=1 // pred_check_branch
      %12 = sbr.rel (0) target = $region5
    $region4: #{tpu_custom_call.1} parent=1 // pred_region
      %s14 = ssub.s32 128, 128
      %15 = vsyncadd [#allocation3], %s14
      %s17 = sshll.u32 [#allocation2], 4
      %s18 = int_to_ptr.vmem [resolvable:$true] %s17
      %20 = dma.hbm_to_vmem [thread:$0]  %s0, 128, %s18, [#allocation3]
    $region5: #{tpu_custom_call.1} parent=1 // pred_fallthru
      _
    // Predicated region
    $region6: #{tpu_custom_call.1} parent=1 // pred_check
      _
    $region7: #{tpu_custom_call.1} parent=1 // pred_check_branch
      %22 = sbr.rel (0) target = $region9
    $region8: #{tpu_custom_call.1} parent=1 // pred_region
      %s24 = ssub.s32 2048, 2048
      %25 = vsyncadd [#allocation6], %s24
      %s26 = sshll.u32 [#allocation5], 4
      %s27 = int_to_ptr.vmem [resolvable:$true] %s26
      %32 = dma.hbm_to_vmem [thread:$0]  %s1, 2048, %s27, [#allocation6], 128, 128, 8
    $region9: #{tpu_custom_call.1} parent=1 // pred_fallthru
      _
    // Predicated region
    $region10: #{tpu_custom_call.1} parent=1 // pred_check
      _
    $region11: #{tpu_custom_call.1} parent=1 // pred_check_branch
      %34 = sbr.rel (0) target = $region13
    $region12: #{tpu_custom_call.1} parent=1 // pred_region
      _
    $region13: #{tpu_custom_call.1} parent=1 // pred_fallthru
      _
    // Predicated region
    $region14: #{tpu_custom_call.1} parent=1 // pred_check
      _
    $region15: #{tpu_custom_call.1} parent=1 // pred_check_branch
      %36 = sbr.rel (0) target = $region17
    $region16: #{tpu_custom_call.1} parent=1 // pred_region
      %37 = dma.done [#allocation3], 128
    $region17: #{tpu_custom_call.1} parent=1 // pred_fallthru
      _
    // Predicated region
    $region18: #{tpu_custom_call.1} parent=1 // pred_check
      _
    $region19: #{tpu_custom_call.1} parent=1 // pred_check_branch
      %39 = sbr.rel (0) target = $region21
    $region20: #{tpu_custom_call.1} parent=1 // pred_region
      %40 = dma.done [#allocation6], 2048
    $region21: #{tpu_custom_call.1} parent=1 // pred_fallthru
      _
    %v41 = vld [vmem:[#allocation2] sm:$0xff]
    %v42 = vld [vmem:[#allocation5] sm:$0xff]
    %v43 = vld [vmem:[#allocation5 + $0x8] sm:$0xff]
    %v44 = vld [vmem:[#allocation5 + $0x10] sm:$0xff]
    %v45 = vld [vmem:[#allocation5 + $0x18] sm:$0xff]
    %v46 = vld [vmem:[#allocation5 + $0x20] sm:$0xff]
    %v47 = vld [vmem:[#allocation5 + $0x28] sm:$0xff]
    %v48 = vld [vmem:[#allocation5 + $0x30] sm:$0xff]
    %v49 = vld [vmem:[#allocation5 + $0x38] sm:$0xff]
    %v50 = vld [vmem:[#allocation5 + $0x40] sm:$0xff]
    %v51 = vld [vmem:[#allocation5 + $0x48] sm:$0xff]
    %v52 = vld [vmem:[#allocation5 + $0x50] sm:$0xff]
    %v53 = vld [vmem:[#allocation5 + $0x58] sm:$0xff]
    %v54 = vld [vmem:[#allocation5 + $0x60] sm:$0xff]
    %v55 = vld [vmem:[#allocation5 + $0x68] sm:$0xff]
    %v56 = vld [vmem:[#allocation5 + $0x70] sm:$0xff]
    %v57 = vld [vmem:[#allocation5 + $0x78] sm:$0xff]
    %v58 = vld [vmem:[%s2] sm:$0x1]
    %v60 = vlaneseq
    %v61 = vshrl.u32 %v60, 7
    %v62 = vsub.s32 0, %v61
    %v63 = vrot.slane %v58, %v62
    %65 = vmatprep.subr.mxu0 0.0
    %66 = vmatpush1.msra.mxu0 %v42
    %67 = vmatprep.subr.mxu0 0.0
    %68 = vmatpush1.msra.mxu0 %v43
    %69 = vmatprep.subr.mxu0 0.0
    %70 = vmatpush1.msra.mxu0 %v44
    %71 = vmatprep.subr.mxu0 0.0
    %72 = vmatpush1.msra.mxu0 %v45
    %73 = vmatprep.subr.mxu0 0.0
    %74 = vmatpush1.msra.mxu0 %v46
    %75 = vmatprep.subr.mxu0 0.0
    %76 = vmatpush1.msra.mxu0 %v47
    %77 = vmatprep.subr.mxu0 0.0
    %78 = vmatpush1.msra.mxu0 %v48
    %79 = vmatprep.subr.mxu0 0.0
    %80 = vmatpush1.msra.mxu0 %v49
    %81 = vmatprep.subr.mxu0 0.0
    %82 = vmatpush1.msra.mxu0 %v50
    %83 = vmatprep.subr.mxu0 0.0
    %84 = vmatpush1.msra.mxu0 %v51
    %85 = vmatprep.subr.mxu0 0.0
    %86 = vmatpush1.msra.mxu0 %v52
    %87 = vmatprep.subr.mxu0 0.0
    %88 = vmatpush1.msra.mxu0 %v53
    %89 = vmatprep.subr.mxu0 0.0
    %90 = vmatpush1.msra.mxu0 %v54
    %91 = vmatprep.subr.mxu0 0.0
    %92 = vmatpush1.msra.mxu0 %v55
    %93 = vmatprep.subr.mxu0 0.0
    %94 = vmatpush1.msra.mxu0 %v56
    %95 = vmatprep.subr.mxu0 0.0
    %96 = vmatpush1.msra.mxu0 %v57
    %97 = vmatprep.subr.mxu0 0.0
    %98 = vmatpush1.msra.mxu0 0.0
    %99 = vmatprep.subr.mxu0 0.0
    %100 = vmatpush1.msra.mxu0 0.0
    %101 = vmatprep.subr.mxu0 0.0
    %102 = vmatpush1.msra.mxu0 0.0
    %103 = vmatprep.subr.mxu0 0.0
    %104 = vmatpush1.msra.mxu0 0.0
    %105 = vmatprep.subr.mxu0 0.0
    %106 = vmatpush1.msra.mxu0 0.0
    %107 = vmatprep.subr.mxu0 0.0
    %108 = vmatpush1.msra.mxu0 0.0
    %109 = vmatprep.subr.mxu0 0.0
    %110 = vmatpush1.msra.mxu0 0.0
    %111 = vmatprep.subr.mxu0 0.0
    %112 = vmatpush1.msra.mxu0 0.0
    %113 = vmatprep.subr.mxu0 0.0
    %114 = vmatpush1.msra.mxu0 0.0
    %115 = vmatprep.subr.mxu0 0.0
    %116 = vmatpush1.msra.mxu0 0.0
    %117 = vmatprep.subr.mxu0 0.0
    %118 = vmatpush1.msra.mxu0 0.0
    %119 = vmatprep.subr.mxu0 0.0
    %120 = vmatpush1.msra.mxu0 0.0
    %121 = vmatprep.subr.mxu0 0.0
    %122 = vmatpush1.msra.mxu0 0.0
    %123 = vmatprep.subr.mxu0 0.0
    %124 = vmatpush1.msra.mxu0 0.0
    %125 = vmatprep.subr.mxu0 0.0
    %126 = vmatpush1.msra.mxu0 0.0
    %127 = vmatprep.subr.mxu0 0.0
    %128 = vmatpush1.msra.mxu0 0.0
    %129 = vmatprep.mubr.f32.mxu0 0.0
    %130 = vmatmul.mubr.f32.gmra.mrb[0].mxu0 %v41
    %v131 = vpop.f32.mrb[0].mxu0
    %v132 = vadd.f32 %v63, %v131
    %v133 = vpop.f32.mrb[0].mxu0
    %134 = vdwg.mxu0
    %135 = vst [vmem:[#allocation7] sm:$0xff] %v132
    // Predicated region
    $region22: #{tpu_custom_call.1} parent=1 // pred_check
      _
    $region23: #{tpu_custom_call.1} parent=1 // pred_check_branch
      %137 = sbr.rel (0) target = $region25
    $region24: #{tpu_custom_call.1} parent=1 // pred_region
      %s139 = ssub.s32 128, 128
      %140 = vsyncadd [#allocation4], %s139
      %s142 = sshll.u32 [#allocation7], 4
      %s143 = int_to_ptr.vmem [resolvable:$true] %s142
      %145 = dma.vmem_to_hbm [thread:$0]  %s143, 128, %s3, [#allocation4]
    $region25: #{tpu_custom_call.1} parent=1 // pred_fallthru
      _
    // Predicated region
    $region26: #{tpu_custom_call.1} parent=1 // pred_check
      _
    $region27: #{tpu_custom_call.1} parent=1 // pred_check_branch
      %147 = sbr.rel (0) target = $region29
    $region28: #{tpu_custom_call.1} parent=1 // pred_region
      %148 = dma.done [#allocation4], 128
    $region29: #{tpu_custom_call.1} parent=1 // pred_fallthru
      _
    %149 = vsyncpa [#allocation3], 1
    %150 = vsyncpa [#allocation6], 1
    %151 = vsyncpa [#allocation4], 1

</llo_original>
